<compile_context>
chip_gen: v7x
topology: tpu7x:2x2x1
jax: 0.10.0
libtpu: 0.0.40
codegen_flags: <defaults>
</compile_context>

<pallas_src>
import functools

import jax
import jax.numpy as jnp
from jax import lax
from jax.experimental import pallas as pl
from jax.experimental.pallas import tpu as pltpu

LANES = 128
SUBLANES = 8
MAX_TILE_ROWS = 1024          # (1024, 128) f32 = 512 KiB per input per buffer


def _round_up(x, m):
    return (x + m - 1) // m * m


def _wbce_kernel(x_ref, t_ref, w_ref, out_ref, *, tile_rows, valid_rows,
                 blocks_per_partial):
    """Accumulates the weighted-BCE sum of this tile into an (8,128) block."""
    c = pl.program_id(0)          # partial-sum index ("parallel")
    i = pl.program_id(1)          # reduction step within a partial ("arbitrary")

    @pl.when(i == 0)
    def _():
        out_ref[...] = jnp.zeros(out_ref.shape, out_ref.dtype)

    x = x_ref[...]
    t = t_ref[...]
    w = w_ref[...]

    # PyTorch clamps the log terms at -100 for numerical stability.
    log_x = jnp.maximum(jnp.log(x), -100.0)
    log_1mx = jnp.maximum(jnp.log1p(-x), -100.0)
    loss = -w * (t * log_x + (1.0 - t) * log_1mx)

    # Mask rows beyond the logical end of the data: covers both a partial last
    # block and the duplicated block produced by the clamped index_map.
    block_idx = c * blocks_per_partial + i            # logical (un-clamped)
    row_idx = block_idx * tile_rows + lax.broadcasted_iota(
        jnp.int32, loss.shape, 0)
    loss = jnp.where(row_idx < valid_rows, loss, 0.0)

    # Fold (tile_rows, 128) -> (8, 128): plain vreg adds on the VPU, no
    # per-step cross-lane reduce, no per-step scalar store.
    out_ref[...] += loss.reshape(tile_rows // SUBLANES, SUBLANES, LANES).sum(axis=0)


def weighted_bce(inp, target, weight, *, max_tile_rows=MAX_TILE_ROWS,
                 num_partials=2):
    """Equivalent of F.binary_cross_entropy(inp, target, weight, reduction='mean')."""
    assert inp.shape == target.shape == weight.shape
    n = inp.size

    def prep(a):
        a = a.reshape(-1)
        if a.dtype != jnp.float32:
            a = a.astype(jnp.float32)   # no-op (no copy) for f32 inputs
        return a

    x, t, w = prep(inp), prep(target), prep(weight)

    # Pad only the ragged tail up to a full 128-lane row (skipped entirely when
    # n is already a multiple of 128).  Pad values contribute exactly 0:
    # x=0.5 keeps both logs finite, w=0 kills the term.
    padded = _round_up(n, LANES)
    pad = padded - n
    if pad:
        x = jnp.pad(x, (0, pad), constant_values=0.5)
        t = jnp.pad(t, (0, pad), constant_values=0.0)
        w = jnp.pad(w, (0, pad), constant_values=0.0)

    rows = padded // LANES
    x2 = x.reshape(rows, LANES)
    t2 = t.reshape(rows, LANES)
    w2 = w.reshape(rows, LANES)

    # Tile size: as large as useful, but never set up a grid bigger than needed
    # for small inputs.  tile_rows is always a multiple of 8 (sublanes).
    tile_rows = min(max_tile_rows, _round_up(rows, SUBLANES))
    total_blocks = pl.cdiv(rows, tile_rows)
    n_part = num_partials if total_blocks >= num_partials else 1
    bpp = pl.cdiv(total_blocks, n_part)      # blocks per partial (rectangular grid)

    def in_map(c, i):
        # Clamp so the DMA never targets a window that is entirely out of
        # bounds; the duplicated block is zeroed by the in-kernel row mask.
        return (jnp.minimum(c * bpp + i, total_blocks - 1), 0)

    tile_spec = pl.BlockSpec((tile_rows, LANES), in_map)

    kernel = functools.partial(
        _wbce_kernel, tile_rows=tile_rows, valid_rows=rows,
        blocks_per_partial=bpp)

    partials = pl.pallas_call(
        kernel,
        out_shape=jax.ShapeDtypeStruct((n_part * SUBLANES, LANES), jnp.float32),
        grid_spec=pltpu.PrefetchScalarGridSpec(
            num_scalar_prefetch=0,
            grid=(n_part, bpp),
            in_specs=[tile_spec, tile_spec, tile_spec],
            out_specs=pl.BlockSpec((SUBLANES, LANES), lambda c, i: (c, 0)),
        ),
        compiler_params=pltpu.CompilerParams(
            dimension_semantics=("parallel", "arbitrary"),
            vmem_limit_bytes=32 * 1024 * 1024),
    )(x2, t2, w2)

    # Final cross-lane reduction of the per-partial (8,128) accumulators.
    return jnp.sum(partials) / jnp.float32(n)


def _reference(inp, target, weight):
    log_x = jnp.maximum(jnp.log(inp), -100.0)
    log_1mx = jnp.maximum(jnp.log1p(-inp), -100.0)
    return jnp.mean(-weight * (target * log_x + (1.0 - target) * log_1mx))


if __name__ == "__main__":
    key = jax.random.PRNGKey(0)

    def make(shape, k):
        k1, k2, k3 = jax.random.split(k, 3)
        inp = jax.random.uniform(k1, shape, jnp.float32,
                                 minval=1e-4, maxval=1.0 - 1e-4)
        target = (jax.random.uniform(k2, shape, jnp.float32) > 0.5).astype(jnp.float32)
        weight = jax.random.uniform(k3, shape, jnp.float32)
        return inp, target, weight

    k_a, k_b = jax.random.split(key)

    # Primary small NCHW example consistent with the module's forward.
    inp, target, weight = make((2, 4, 16, 16), k_a)
    out = weighted_bce(inp, target, weight)
    jax.block_until_ready(out)
    ref = _reference(inp, target, weight)
    assert jnp.allclose(out, ref, rtol=3e-5, atol=1e-6), (out, ref)

    # Odd-sized check: exercises the tail padding, a partial last block, the
    # two-partial "parallel" grid axis and the clamped duplicate block.
    inp, target, weight = make((1, 1, 2500, 130), k_b)
    out = weighted_bce(inp, target, weight)
    jax.block_until_ready(out)
    ref = _reference(inp, target, weight)
    assert jnp.allclose(out, ref, rtol=3e-5, atol=1e-6), (out, ref)

    print("KERNEL_OK")
</pallas_src>

<mosaic_0001>
module attributes {stable_mosaic.version = 11 : i64} {
  func.func @_wbce_kernel(%arg0: i32, %arg1: i32, %arg2: memref<16x128xf32, #tpu.memory_space<vmem>>, %arg3: memref<16x128xf32, #tpu.memory_space<vmem>>, %arg4: memref<16x128xf32, #tpu.memory_space<vmem>>, %arg5: memref<8x128xf32, #tpu.memory_space<vmem>>) attributes {dimension_semantics = [#tpu.dimension_semantics<parallel>, #tpu.dimension_semantics<arbitrary>], iteration_bounds = array<i64: 1, 1>, scalar_prefetch = 0 : i64, scratch_operands = 0 : i64, tpu.core_type = #tpu.core_type<tc>, window_params = [{transform_indices = @transform_0, window_bounds = array<i64: 16, 128>}, {transform_indices = @transform_1, window_bounds = array<i64: 16, 128>}, {transform_indices = @transform_2, window_bounds = array<i64: 16, 128>}, {transform_indices = @transform_3, window_bounds = array<i64: 8, 128>}]} {
    %c0_i32 = arith.constant 0 : i32
    %0 = arith.cmpi eq, %arg1, %c0_i32 : i32
    %1 = arith.extui %0 : i1 to i32
    %c0_i32_0 = arith.constant 0 : i32
    %2 = arith.cmpi ne, %1, %c0_i32_0 : i32
    scf.if %2 {
      %cst_17 = arith.constant 0.000000e+00 : f32
      %37 = vector.broadcast %cst_17 : f32 to vector<8x128xf32>
      %c0_18 = arith.constant 0 : index
      %c0_19 = arith.constant 0 : index
      %38 = vector.load %arg5[%c0_18, %c0_19] : memref<8x128xf32, #tpu.memory_space<vmem>>, vector<8x128xf32>
      tpu.vector_store %arg5[%c0_18, %c0_19], %37 {strides = array<i32>} : memref<8x128xf32, #tpu.memory_space<vmem>>, vector<8x128xf32>,
    } else {
    }
    %c0 = arith.constant 0 : index
    %c0_1 = arith.constant 0 : index
    %3 = vector.load %arg2[%c0, %c0_1] : memref<16x128xf32, #tpu.memory_space<vmem>>, vector<16x128xf32>
    %c0_2 = arith.constant 0 : index
    %c0_3 = arith.constant 0 : index
    %4 = vector.load %arg3[%c0_2, %c0_3] : memref<16x128xf32, #tpu.memory_space<vmem>>, vector<16x128xf32>
    %c0_4 = arith.constant 0 : index
    %c0_5 = arith.constant 0 : index
    %5 = vector.load %arg4[%c0_4, %c0_5] : memref<16x128xf32, #tpu.memory_space<vmem>>, vector<16x128xf32>
    %6 = math.log %3 : vector<16x128xf32>
    %cst = arith.constant -1.000000e+02 : f32
    %7 = vector.broadcast %cst : f32 to vector<16x128xf32>
    %8 = arith.maximumf %6, %7 : vector<16x128xf32>
    %cst_6 = arith.constant 0.000000e+00 : f32
    %9 = vector.broadcast %cst_6 : f32 to vector<16x128xf32>
    %10 = arith.subf %9, %3 : vector<16x128xf32>
    %11 = math.log1p %10 : vector<16x128xf32>
    %cst_7 = arith.constant -1.000000e+02 : f32
    %12 = vector.broadcast %cst_7 : f32 to vector<16x128xf32>
    %13 = arith.maximumf %11, %12 : vector<16x128xf32>
    %cst_8 = arith.constant 0.000000e+00 : f32
    %14 = vector.broadcast %cst_8 : f32 to vector<16x128xf32>
    %15 = arith.subf %14, %5 : vector<16x128xf32>
    %16 = arith.mulf %4, %8 : vector<16x128xf32>
    %cst_9 = arith.constant 1.000000e+00 : f32
    %17 = vector.broadcast %cst_9 : f32 to vector<16x128xf32>
    %18 = arith.subf %17, %4 : vector<16x128xf32>
    %19 = arith.mulf %18, %13 : vector<16x128xf32>
    %20 = arith.addf %16, %19 : vector<16x128xf32>
    %21 = arith.mulf %15, %20 : vector<16x128xf32>
    %c1_i32 = arith.constant 1 : i32
    %22 = arith.muli %arg0, %c1_i32 : i32
    %23 = arith.addi %22, %arg1 : i32
    %c16_i32 = arith.constant 16 : i32
    %24 = arith.muli %23, %c16_i32 : i32
    %25 = tpu.iota {dimensions = array<i32: 0>} : vector<16x128xi32>
    %26 = vector.broadcast %24 : i32 to vector<16x128xi32>
    %27 = arith.addi %26, %25 : vector<16x128xi32>
    %c16_i32_10 = arith.constant 16 : i32
    %28 = vector.broadcast %c16_i32_10 : i32 to vector<16x128xi32>
    %29 = arith.cmpi slt, %27, %28 : vector<16x128xi32>
    %cst_11 = arith.constant 0.000000e+00 : f32
    %30 = vector.broadcast %cst_11 : f32 to vector<16x128xf32>
    %31 = arith.select %29, %21, %30 : vector<16x128xi1>, vector<16x128xf32>
    %c0_12 = arith.constant 0 : index
    %c0_13 = arith.constant 0 : index
    %32 = vector.load %arg5[%c0_12, %c0_13] : memref<8x128xf32, #tpu.memory_space<vmem>>, vector<8x128xf32>
    %33 = vector.shape_cast %31 : vector<16x128xf32> to vector<2x8x128xf32>
    %cst_14 = arith.constant dense<0.000000e+00> : vector<8x128xf32>
    %34 = vector.multi_reduction <add>, %33, %cst_14 [0] : vector<2x8x128xf32> to vector<8x128xf32>
    %35 = arith.addf %32, %34 : vector<8x128xf32>
    %c0_15 = arith.constant 0 : index
    %c0_16 = arith.constant 0 : index
    %36 = vector.load %arg5[%c0_15, %c0_16] : memref<8x128xf32, #tpu.memory_space<vmem>>, vector<8x128xf32>
    tpu.vector_store %arg5[%c0_15, %c0_16], %35 {strides = array<i32>} : memref<8x128xf32, #tpu.memory_space<vmem>>, vector<8x128xf32>,
    return
  }
  func.func @transform_0(%arg0: i32, %arg1: i32) -> (i32, i32) {
    %c1_i32 = arith.constant 1 : i32
    %0 = arith.muli %arg0, %c1_i32 : i32
    %1 = arith.addi %0, %arg1 : i32
    %c0_i32 = arith.constant 0 : i32
    %2 = arith.minsi %1, %c0_i32 : i32
    %c0_i32_0 = arith.constant 0 : i32
    %c0_i32_1 = arith.constant 0 : i32
    return %2, %c0_i32_0 : i32, i32
  }
  func.func @transform_1(%arg0: i32, %arg1: i32) -> (i32, i32) {
    %c1_i32 = arith.constant 1 : i32
    %0 = arith.muli %arg0, %c1_i32 : i32
    %1 = arith.addi %0, %arg1 : i32
    %c0_i32 = arith.constant 0 : i32
    %2 = arith.minsi %1, %c0_i32 : i32
    %c0_i32_0 = arith.constant 0 : i32
    %c0_i32_1 = arith.constant 0 : i32
    return %2, %c0_i32_0 : i32, i32
  }
  func.func @transform_2(%arg0: i32, %arg1: i32) -> (i32, i32) {
    %c1_i32 = arith.constant 1 : i32
    %0 = arith.muli %arg0, %c1_i32 : i32
    %1 = arith.addi %0, %arg1 : i32
    %c0_i32 = arith.constant 0 : i32
    %2 = arith.minsi %1, %c0_i32 : i32
    %c0_i32_0 = arith.constant 0 : i32
    %c0_i32_1 = arith.constant 0 : i32
    return %2, %c0_i32_0 : i32, i32
  }
  func.func @transform_3(%arg0: i32, %arg1: i32) -> (i32, i32) {
    %c0_i32 = arith.constant 0 : i32
    %c0_i32_0 = arith.constant 0 : i32
    return %arg0, %c0_i32 : i32, i32
  }
}

</mosaic_0001>

<llo_original>
// kernel: tpu_custom_call.1
$region0: #{tpu_custom_call.1}
  #allocation0 [shape = 'u32[]', space=smem, size = 0x4, offset = 0x4, fixed_abs, tag = 'smem constant byte address 0x4 - core index']
  #allocation1 [shape = 'u32[144,128]{1,0:T(1,128)}', space=vmem, size = 0x12000, scoped, tag = 'internal scratch']
  %s0 = inlined_call_operand.hbm [shape: f32[16,128], index: 0, kind: input, shape index: {}]
  %s1 = inlined_call_operand.hbm [shape: f32[16,128], index: 1, kind: input, shape index: {}]
  %s2 = inlined_call_operand.hbm [shape: f32[16,128], index: 2, kind: input, shape index: {}]
  %s3 = inlined_call_operand.hbm [shape: f32[8,128], index: 3, kind: output, shape index: {}]
  %s4 = sld [smem:[#allocation0]]
  $region38: #{tpu_custom_call.1} parent=0
    _
  %s6 = ssub.s32 1, %s4
  %s7 = scalar_select 0, %s6, %s4
  $region1: #{tpu_custom_call.1} parent=0
    #allocation2 [shape = 'u8[8192]{0}', space=vmem, size = 0x2000, scoped, tag = 'input window, operand 0, single buffered']
    #allocation3 [shape = 's32[1]{0}', space=sflag, size = 0x4, scoped, tag = 'scoped memory for tpu_custom_call.1']
    #allocation4 [shape = 's32[1]{0}', space=sflag, size = 0x4, scoped, tag = 'scoped memory for tpu_custom_call.1']
    #allocation5 [shape = 'u8[8192]{0}', space=vmem, size = 0x2000, scoped, tag = 'input window, operand 1, single buffered']
    #allocation6 [shape = 's32[1]{0}', space=sflag, size = 0x4, scoped, tag = 'scoped memory for tpu_custom_call.1']
    #allocation7 [shape = 'u8[8192]{0}', space=vmem, size = 0x2000, scoped, tag = 'input window, operand 2, single buffered']
    #allocation8 [shape = 'u8[4096]{0}', space=vmem, size = 0x1000, scoped, tag = 'output window, operand 0, single buffered']
    %8 = vsyncpa [#allocation3], 0
    %9 = vsyncpa [#allocation6], 0
    %10 = vsyncpa [#allocation4], 0
    // Predicated region
    $region2: #{tpu_custom_call.1} parent=1 // pred_check
      _
    $region3: #{tpu_custom_call.1} parent=1 // pred_check_branch
      %12 = sbr.rel (0) target = $region5
    $region4: #{tpu_custom_call.1} parent=1 // pred_region
      %s13 = sadd.s32 0, 0
      %p14 = scmp.lt.s32.totalorder %s13, 0
      %s15 = scalar_select %p14, %s13, 0
      %s16 = smul.u32 2, %s15
      %s18 = ssub.s32 256, 256
      %19 = vsyncadd [#allocation3], %s18
      %s20 = smul.addr %s16, 128
      %s21 = scalar_lea.hbm %s0, %s20
      %s22 = sshll.u32 [#allocation2], 4
      %s23 = int_to_ptr.vmem [resolvable:$true] %s22
      %28 = dma.hbm_to_vmem [thread:$0]  %s21, 256, %s23, [#allocation3], 128, 128, 8
    $region5: #{tpu_custom_call.1} parent=1 // pred_fallthru
      _
    // Predicated region
    $region6: #{tpu_custom_call.1} parent=1 // pred_check
      _
    $region7: #{tpu_custom_call.1} parent=1 // pred_check_branch
      %30 = sbr.rel (0) target = $region9
    $region8: #{tpu_custom_call.1} parent=1 // pred_region
      %s31 = sadd.s32 0, 0
      %p32 = scmp.lt.s32.totalorder %s31, 0
      %s33 = scalar_select %p32, %s31, 0
      %s34 = smul.u32 2, %s33
      %s36 = ssub.s32 256, 256
      %37 = vsyncadd [#allocation6], %s36
      %s38 = smul.addr %s34, 128
      %s39 = scalar_lea.hbm %s1, %s38
      %s40 = sshll.u32 [#allocation5], 4
      %s41 = int_to_ptr.vmem [resolvable:$true] %s40
      %46 = dma.hbm_to_vmem [thread:$0]  %s39, 256, %s41, [#allocation6], 128, 128, 8
    $region9: #{tpu_custom_call.1} parent=1 // pred_fallthru
      _
    // Predicated region
    $region10: #{tpu_custom_call.1} parent=1 // pred_check
      _
    $region11: #{tpu_custom_call.1} parent=1 // pred_check_branch
      %48 = sbr.rel (0) target = $region13
    $region12: #{tpu_custom_call.1} parent=1 // pred_region
      %s49 = sadd.s32 0, 0
      %p50 = scmp.lt.s32.totalorder %s49, 0
      %s51 = scalar_select %p50, %s49, 0
      %s52 = smul.u32 2, %s51
      %s54 = ssub.s32 256, 256
      %55 = vsyncadd [#allocation6], %s54
      %s56 = smul.addr %s52, 128
      %s57 = scalar_lea.hbm %s2, %s56
      %s58 = sshll.u32 [#allocation7], 4
      %s59 = int_to_ptr.vmem [resolvable:$true] %s58
      %64 = dma.hbm_to_vmem [thread:$0]  %s57, 256, %s59, [#allocation6], 128, 128, 8
    $region13: #{tpu_custom_call.1} parent=1 // pred_fallthru
      _
    // Predicated region
    $region14: #{tpu_custom_call.1} parent=1 // pred_check
      _
    $region15: #{tpu_custom_call.1} parent=1 // pred_check_branch
      %66 = sbr.rel (0) target = $region17
    $region16: #{tpu_custom_call.1} parent=1 // pred_region
      %67 = dma.done [#allocation3], 256
    $region17: #{tpu_custom_call.1} parent=1 // pred_fallthru
      _
    // Predicated region
    $region18: #{tpu_custom_call.1} parent=1 // pred_check
      _
    $region19: #{tpu_custom_call.1} parent=1 // pred_check_branch
      %69 = sbr.rel (0) target = $region21
    $region20: #{tpu_custom_call.1} parent=1 // pred_region
      %70 = dma.done [#allocation6], 256
    $region21: #{tpu_custom_call.1} parent=1 // pred_fallthru
      _
    // Predicated region
    $region22: #{tpu_custom_call.1} parent=1 // pred_check
      _
    $region23: #{tpu_custom_call.1} parent=1 // pred_check_branch
      %72 = sbr.rel (0) target = $region25
    $region24: #{tpu_custom_call.1} parent=1 // pred_region
      %73 = dma.done [#allocation6], 256
    $region25: #{tpu_custom_call.1} parent=1 // pred_fallthru
      _
    %s74 = sadd.s32 0, 0
    %p75 = scmp.lt.s32.totalorder %s74, 0
    %s76 = scalar_select %p75, %s74, 0
    %s77 = smul.u32 2, %s76
    %s78 = sadd.s32 0, 0
    %p79 = scmp.lt.s32.totalorder %s78, 0
    %s80 = scalar_select %p79, %s78, 0
    %s81 = smul.u32 2, %s80
    %s82 = sadd.s32 0, 0
    %p83 = scmp.lt.s32.totalorder %s82, 0
    %s84 = scalar_select %p83, %s82, 0
    %s85 = smul.u32 2, %s84
    %p86 = scmp.eq.s32.totalorder 0, 0
    // Predicated region
    $region26: #{tpu_custom_call.1} parent=1 // pred_check
      %p87 = pneg %p86
    $region27: #{tpu_custom_call.1} parent=1 // pred_check_branch
      %89 = sbr.rel (%p87) target = $region29
    $region28: #{tpu_custom_call.1} parent=1 // pred_region
      %90 = vst [vmem:[#allocation8] sm:$0xff] 0.0
    $region29: #{tpu_custom_call.1} parent=1 // pred_fallthru
      _
    %v91 = vld [vmem:[#allocation2] sm:$0xff]
    %v92 = vld [vmem:[#allocation2 + $0x8] sm:$0xff]
    %v93 = vld [vmem:[#allocation5] sm:$0xff]
    %v94 = vld [vmem:[#allocation5 + $0x8] sm:$0xff]
    %v95 = vld [vmem:[#allocation7] sm:$0xff]
    %v96 = vld [vmem:[#allocation7 + $0x8] sm:$0xff]
    %v97 = vlog2.pop %v91
    %v98 = vmul.f32 %v97, 0.6931472
    %v99 = vlog2.pop %v92
    %v100 = vmul.f32 %v99, 0.6931472
    %v101 = vmax.f32 %v98, -100.0
    %v102 = vmax.f32 %v100, -100.0
    %v103 = vsub.f32 0.0, %v91
    %v104 = vsub.f32 0.0, %v92
    %v105 = vadd.f32 %v103, 1.0
    %v106 = vlog2.pop %v105
    %v107 = vmul.f32 %v106, 0.6931472
    %v108 = vmul.f32 -0.5, %v103
    %v109 = vadd.f32 %v108, 1.0
    %v110 = vmul.f32 %v109, %v103
    %v111 = vand.u32 2147483647, %v103
    %vm112 = vcmp.lt.f32.partialorder %v111, 0.0004427343
    %v113 = vsel %vm112, %v110, %v107
    %v114 = vadd.f32 %v104, 1.0
    %v115 = vlog2.pop %v114
    %v116 = vmul.f32 %v115, 0.6931472
    %v117 = vmul.f32 -0.5, %v104
    %v118 = vadd.f32 %v117, 1.0
    %v119 = vmul.f32 %v118, %v104
    %v120 = vand.u32 2147483647, %v104
    %vm121 = vcmp.lt.f32.partialorder %v120, 0.0004427343
    %v122 = vsel %vm121, %v119, %v116
    %v123 = vmax.f32 %v113, -100.0
    %v124 = vmax.f32 %v122, -100.0
    %v125 = vsub.f32 0.0, %v95
    %v126 = vsub.f32 0.0, %v96
    %v127 = vmul.f32 %v93, %v101
    %v128 = vmul.f32 %v94, %v102
    %v129 = vsub.f32 1.0, %v93
    %v130 = vsub.f32 1.0, %v94
    %v131 = vmul.f32 %v129, %v123
    %v132 = vmul.f32 %v130, %v124
    %v133 = vadd.f32 %v127, %v131
    %v134 = vadd.f32 %v128, %v132
    %v135 = vmul.f32 %v125, %v133
    %v136 = vmul.f32 %v126, %v134
    %s137 = sadd.s32 0, 0
    %s138 = smul.u32 %s137, 16
    %v139 = vlaneseq
    %v140 = vshrl.u32 %v139, 7
    %v141 = vadd.s32 %v140, 8
    %v142 = vstv %s138
    %v143 = vadd.s32 %v142, %v140
    %v144 = vadd.s32 %v142, %v141
    %vm145 = vcmp.lt.s32.totalorder %v143, 16
    %vm146 = vcmp.lt.s32.totalorder %v144, 16
    %v147 = vsel %vm145, %v135, 0.0
    %v148 = vsel %vm146, %v136, 0.0
    %v149 = vld [vmem:[#allocation8] sm:$0xff]
    %v150 = vadd.f32 %v147, %v148
    %v151 = vadd.f32 %v149, %v150
    %152 = vst [vmem:[#allocation8] sm:$0xff] %v151
    // Predicated region
    $region30: #{tpu_custom_call.1} parent=1 // pred_check
      _
    $region31: #{tpu_custom_call.1} parent=1 // pred_check_branch
      %154 = sbr.rel (0) target = $region33
    $region32: #{tpu_custom_call.1} parent=1 // pred_region
      %s156 = ssub.s32 128, 128
      %157 = vsyncadd [#allocation4], %s156
      %s159 = sshll.u32 [#allocation8], 4
      %s160 = int_to_ptr.vmem [resolvable:$true] %s159
      %162 = dma.vmem_to_hbm [thread:$0]  %s160, 128, %s3, [#allocation4]
    $region33: #{tpu_custom_call.1} parent=1 // pred_fallthru
      _
    // Predicated region
    $region34: #{tpu_custom_call.1} parent=1 // pred_check
      _
    $region35: #{tpu_custom_call.1} parent=1 // pred_check_branch
      %164 = sbr.rel (0) target = $region37
    $region36: #{tpu_custom_call.1} parent=1 // pred_region
      %165 = dma.done [#allocation4], 128
    $region37: #{tpu_custom_call.1} parent=1 // pred_fallthru
      _
    %166 = vsyncpa [#allocation3], 1
    %167 = vsyncpa [#allocation6], 1
    %168 = vsyncpa [#allocation4], 1

</llo_original>
